<compile_context>
chip_gen: v6e
topology: v6e:2x2x1
jax: 0.10.0
libtpu: 0.0.40
codegen_flags: <defaults>
</compile_context>

<pallas_src>
import functools

import jax
import jax.numpy as jnp
from jax.experimental import pallas as pl
from jax.experimental.pallas import tpu as pltpu


def _round_up(x, m):
    return ((x + m - 1) // m) * m


def _ce_label_smooth_kernel(x_ref, tgt_ref, out_ref, *, epsilon, num_classes, num_rows):
    """One batch tile: un-normalized partial label-smoothed CE sum.

    x_ref:   (TB, K_pad) logits in native dtype (upcast to f32 here)
    tgt_ref: (TB, 1) int32 class indices
    out_ref: (1, 8, 128) f32 — this tile's partial loss, broadcast lane-dense
    """
    i = pl.program_id(0)
    x = x_ref[...].astype(jnp.float32)                          # (TB, Kp) f32 math everywhere
    tb, kp = x.shape

    cls = jax.lax.broadcasted_iota(jnp.int32, (tb, kp), 1)      # class ids (needed for gather)

    # Class-padding mask (static: folds away when K is already lane-aligned).
    if kp == num_classes:
        masked = lambda v, fill: v
    else:
        valid_cls = cls < num_classes
        masked = lambda v, fill: jnp.where(valid_cls, v, fill)

    neg_big = jnp.float32(-1e30)

    # Numerically stable log-softmax pieces (all f32: v5e has no bf16 VPU/EUP anyway).
    m = jnp.max(masked(x, neg_big), axis=-1, keepdims=True)     # (TB, 1)
    shifted = x - m
    sumexp = jnp.sum(jnp.exp(masked(shifted, neg_big)), axis=-1, keepdims=True)
    lse = jnp.log(sumexp)                                       # (TB, 1)

    # sum_k log_probs = sum_k shifted - K * lse   (valid classes only)
    sum_shifted = jnp.sum(masked(shifted, 0.0), axis=-1, keepdims=True)
    sum_logp = sum_shifted - jnp.float32(num_classes) * lse     # (TB, 1)

    # log_probs[target] = shifted[target] - lse, via a single masked lane reduce.
    tgt = tgt_ref[...]                                          # (TB, 1) int32
    tgt_shifted = jnp.sum(jnp.where(cls == tgt, shifted, 0.0), axis=-1, keepdims=True)
    tgt_logp = tgt_shifted - lse                                # (TB, 1)

    row_loss = (-(1.0 - epsilon)) * tgt_logp - (epsilon / num_classes) * sum_logp  # (TB, 1)

    # Mask padded batch rows (only needed when B % TB != 0 — static check).
    if num_rows % tb != 0:
        row_ids = jax.lax.broadcasted_iota(jnp.int32, (tb, 1), 0) + i * tb
        row_loss = row_loss * (row_ids < num_rows).astype(jnp.float32)

    partial = jnp.sum(row_loss)                                 # scalar

    # Lane-dense, unmasked store of the per-tile partial.
    out_ref[...] = jnp.broadcast_to(partial, out_ref.shape).astype(out_ref.dtype)


def cross_entropy_label_smooth(inputs, targets, *, num_classes, epsilon=0.1):
    """Pallas equivalent of CrossEntropyLabelSmooth.forward.

    Args:
      inputs:  (batch, num_classes) logits (pre-softmax), any float dtype (kept native).
      targets: (batch,) int class indices.
    Returns:
      scalar float32 loss = mean over batch, summed over classes of -smoothed * log_softmax.
    """
    B, K = inputs.shape
    assert K == num_classes

    # Lane-dense class axis.
    K_pad = max(128, _round_up(K, 128))

    # Batch tile: biggest multiple of 8 (<=512 rows) that keeps the double-buffered logits
    # block comfortably inside scoped VMEM on every generation (incl. v7x's smaller VMEM).
    bytes_per_row = K_pad * inputs.dtype.itemsize
    tb = min(512, max(8, (3 * 1024 * 1024) // bytes_per_row))
    tb = max(8, (tb // 8) * 8)
    tb = min(tb, _round_up(B, 8))
    B_pad = _round_up(B, tb)
    num_tiles = B_pad // tb

    # No wrapper-side dtype cast — stream logits as-is (kernel upcasts to f32).
    x = inputs
    if (B_pad != B) or (K_pad != K):
        x = jnp.pad(x, ((0, B_pad - B), (0, K_pad - K)))
    tgt = targets.astype(jnp.int32)
    if B_pad != B:
        tgt = jnp.pad(tgt, ((0, B_pad - B),))
    # Targets kept as a (TB, 1) int32 VMEM block: the masked target gather needs them as a
    # vector, and their DMA cost (4*TB bytes/tile) is negligible vs. the logits stream.
    tgt2d = tgt.reshape(B_pad, 1)

    kernel = functools.partial(
        _ce_label_smooth_kernel,
        epsilon=float(epsilon),
        num_classes=int(num_classes),
        num_rows=int(B),
    )

    partials = pl.pallas_call(
        kernel,
        out_shape=jax.ShapeDtypeStruct((num_tiles, 8, 128), jnp.float32),
        grid=(num_tiles,),
        in_specs=[
            pl.BlockSpec((tb, K_pad), lambda i: (i, 0)),
            pl.BlockSpec((tb, 1), lambda i: (i, 0)),
        ],
        out_specs=pl.BlockSpec((1, 8, 128), lambda i: (i, 0, 0)),
        compiler_params=pltpu.CompilerParams(
            dimension_semantics=("parallel",),        # lets v7x shard tiles across both TCs
            vmem_limit_bytes=32 * 1024 * 1024,
        ),
    )(x, tgt2d)

    return jnp.sum(partials[:, 0, 0]) / jnp.float32(B)


def _reference(inputs, targets, num_classes, epsilon=0.1):
    # Pure-JAX reference mirroring the PyTorch module.
    log_probs = jax.nn.log_softmax(inputs.astype(jnp.float32), axis=1)
    onehot = jax.nn.one_hot(targets, num_classes, dtype=jnp.float32)
    smoothed = (1.0 - epsilon) * onehot + epsilon / num_classes
    return jnp.sum(jnp.mean(-smoothed * log_probs, axis=0))


if __name__ == "__main__":
    B = 8              # batch_size
    K = 32             # num_classes
    EPS = 0.1

    key = jax.random.PRNGKey(0)
    k_logits, k_labels, k2a, k2b = jax.random.split(key, 4)

    # Small primary example (f32 logits).
    logits = jax.random.normal(k_logits, (B, K), dtype=jnp.float32) * 3.0
    labels = jax.random.randint(k_labels, (B,), 0, K, dtype=jnp.int32)

    loss = cross_entropy_label_smooth(logits, labels, num_classes=K, epsilon=EPS)
    loss = jax.block_until_ready(loss)
    ref = _reference(logits, labels, K, EPS)
    assert jnp.allclose(loss, ref, rtol=1e-5, atol=1e-5), (loss, ref)

    # Same inputs streamed as bf16 (native-dtype path; f32 math inside the kernel).
    loss_bf = cross_entropy_label_smooth(
        logits.astype(jnp.bfloat16), labels, num_classes=K, epsilon=EPS)
    loss_bf = jax.block_until_ready(loss_bf)
    ref_bf = _reference(logits.astype(jnp.bfloat16), labels, K, EPS)
    assert jnp.allclose(loss_bf, ref_bf, rtol=1e-4, atol=1e-4), (loss_bf, ref_bf)

    # Moderate shape exercising multi-tile grid, batch-row masking, and class padding.
    B2, K2 = 600, 1000
    logits2 = jax.random.normal(k2a, (B2, K2), dtype=jnp.float32) * 2.0
    labels2 = jax.random.randint(k2b, (B2,), 0, K2, dtype=jnp.int32)
    loss2 = cross_entropy_label_smooth(logits2, labels2, num_classes=K2, epsilon=EPS)
    loss2 = jax.block_until_ready(loss2)
    ref2 = _reference(logits2, labels2, K2, EPS)
    assert jnp.allclose(loss2, ref2, rtol=1e-4, atol=1e-4), (loss2, ref2)

    print("KERNEL_OK")
</pallas_src>

<mosaic_0001>
module attributes {stable_mosaic.version = 11 : i64} {
  func.func @_ce_label_smooth_kernel(%arg0: i32, %arg1: memref<8x128xf32, #tpu.memory_space<vmem>>, %arg2: memref<8x1xi32, #tpu.memory_space<vmem>>, %arg3: memref<1x8x128xf32, #tpu.memory_space<vmem>>) attributes {dimension_semantics = [#tpu.dimension_semantics<parallel>], iteration_bounds = array<i64: 1>, scalar_prefetch = 0 : i64, scratch_operands = 0 : i64, tpu.core_type = #tpu.core_type<tc>, window_params = [{transform_indices = @transform_0, window_bounds = array<i64: 8, 128>}, {transform_indices = @transform_1, window_bounds = array<i64: 8, 1>}, {transform_indices = @transform_2, window_bounds = array<i64: 1, 8, 128>}]} {
    %c0 = arith.constant 0 : index
    %c0_0 = arith.constant 0 : index
    %0 = vector.load %arg1[%c0, %c0_0] : memref<8x128xf32, #tpu.memory_space<vmem>>, vector<8x128xf32>
    %1 = tpu.iota {dimensions = array<i32: 1>} : vector<8x128xi32>
    %c32_i32 = arith.constant 32 : i32
    %2 = vector.broadcast %c32_i32 : i32 to vector<8x128xi32>
    %3 = arith.cmpi slt, %1, %2 : vector<8x128xi32>
    %cst = arith.constant -1.000000e+30 : f32
    %4 = vector.broadcast %cst : f32 to vector<8x128xf32>
    %5 = arith.select %3, %0, %4 : vector<8x128xi1>, vector<8x128xf32>
    %cst_1 = arith.constant dense<0xFF800000> : vector<8xf32>
    %6 = vector.multi_reduction <maximumf>, %5, %cst_1 [1] : vector<8x128xf32> to vector<8xf32>
    %7 = vector.shape_cast %6 : vector<8xf32> to vector<8x1xf32>
    %8 = vector.broadcast %7 : vector<8x1xf32> to vector<8x128xf32>
    %9 = arith.subf %0, %8 : vector<8x128xf32>
    %cst_2 = arith.constant -1.000000e+30 : f32
    %10 = vector.broadcast %cst_2 : f32 to vector<8x128xf32>
    %11 = arith.select %3, %9, %10 : vector<8x128xi1>, vector<8x128xf32>
    %12 = math.exp %11 : vector<8x128xf32>
    %cst_3 = arith.constant dense<0.000000e+00> : vector<8xf32>
    %13 = vector.multi_reduction <add>, %12, %cst_3 [1] : vector<8x128xf32> to vector<8xf32>
    %14 = vector.shape_cast %13 : vector<8xf32> to vector<8x1xf32>
    %15 = math.log %14 : vector<8x1xf32>
    %cst_4 = arith.constant 0.000000e+00 : f32
    %16 = vector.broadcast %cst_4 : f32 to vector<8x128xf32>
    %17 = arith.select %3, %9, %16 : vector<8x128xi1>, vector<8x128xf32>
    %cst_5 = arith.constant dense<0.000000e+00> : vector<8xf32>
    %18 = vector.multi_reduction <add>, %17, %cst_5 [1] : vector<8x128xf32> to vector<8xf32>
    %19 = vector.shape_cast %18 : vector<8xf32> to vector<8x1xf32>
    %cst_6 = arith.constant 3.200000e+01 : f32
    %20 = vector.broadcast %cst_6 : f32 to vector<8x1xf32>
    %21 = arith.mulf %20, %15 : vector<8x1xf32>
    %22 = arith.subf %19, %21 : vector<8x1xf32>
    %c0_7 = arith.constant 0 : index
    %c0_8 = arith.constant 0 : index
    %23 = vector.load %arg2[%c0_7, %c0_8] : memref<8x1xi32, #tpu.memory_space<vmem>>, vector<8x1xi32>
    %24 = vector.broadcast %23 : vector<8x1xi32> to vector<8x128xi32>
    %25 = arith.cmpi eq, %1, %24 : vector<8x128xi32>
    %cst_9 = arith.constant 0.000000e+00 : f32
    %26 = vector.broadcast %cst_9 : f32 to vector<8x128xf32>
    %27 = arith.select %25, %9, %26 : vector<8x128xi1>, vector<8x128xf32>
    %cst_10 = arith.constant dense<0.000000e+00> : vector<8xf32>
    %28 = vector.multi_reduction <add>, %27, %cst_10 [1] : vector<8x128xf32> to vector<8xf32>
    %29 = vector.shape_cast %28 : vector<8xf32> to vector<8x1xf32>
    %30 = arith.subf %29, %15 : vector<8x1xf32>
    %cst_11 = arith.constant -0.899999976 : f32
    %31 = vector.broadcast %cst_11 : f32 to vector<8x1xf32>
    %32 = arith.mulf %31, %30 : vector<8x1xf32>
    %cst_12 = arith.constant 3.125000e-03 : f32
    %33 = vector.broadcast %cst_12 : f32 to vector<8x1xf32>
    %34 = arith.mulf %33, %22 : vector<8x1xf32>
    %35 = arith.subf %32, %34 : vector<8x1xf32>
    %36 = vector.shape_cast %35 : vector<8x1xf32> to vector<1x8x1xf32>
    %cst_13 = arith.constant dense<0.000000e+00> : vector<1xf32>
    %37 = vector.multi_reduction <add>, %36, %cst_13 [1, 2] : vector<1x8x1xf32> to vector<1xf32>
    %38 = vector.shape_cast %37 : vector<1xf32> to vector<1x1x1xf32>
    %39 = vector.extract %38[0, 0, 0] : f32 from vector<1x1x1xf32>
    %40 = vector.broadcast %39 : f32 to vector<1x8x128xf32>
    %c0_14 = arith.constant 0 : index
    %c0_15 = arith.constant 0 : index
    %c0_16 = arith.constant 0 : index
    %41 = vector.load %arg3[%c0_14, %c0_15, %c0_16] : memref<1x8x128xf32, #tpu.memory_space<vmem>>, vector<1x8x128xf32>
    tpu.vector_store %arg3[%c0_14, %c0_15, %c0_16], %40 {strides = array<i32>} : memref<1x8x128xf32, #tpu.memory_space<vmem>>, vector<1x8x128xf32>,
    return
  }
  func.func @transform_0(%arg0: i32) -> (i32, i32) {
    %c0_i32 = arith.constant 0 : i32
    %c0_i32_0 = arith.constant 0 : i32
    return %arg0, %c0_i32 : i32, i32
  }
  func.func @transform_1(%arg0: i32) -> (i32, i32) {
    %c0_i32 = arith.constant 0 : i32
    %c0_i32_0 = arith.constant 0 : i32
    return %arg0, %c0_i32 : i32, i32
  }
  func.func @transform_2(%arg0: i32) -> (i32, i32, i32) {
    %c0_i32 = arith.constant 0 : i32
    %c0_i32_0 = arith.constant 0 : i32
    %c0_i32_1 = arith.constant 0 : i32
    return %arg0, %c0_i32, %c0_i32_0 : i32, i32, i32
  }
}

</mosaic_0001>

<llo_original>
// kernel: tpu_custom_call.1
$region0: #{tpu_custom_call.1}
  #allocation0 [shape = 'u32[]', space=smem, size = 0x4, offset = 0x4, fixed_abs, tag = 'smem constant byte address 0x4 - core index']
  #allocation1 [shape = 'u32[144,128]{1,0:T(1,128)}', space=vmem, size = 0x12000, scoped, tag = 'internal scratch']
  %s0 = inlined_call_operand.vmem [shape: f32[8,128], index: 0, kind: input, shape index: {}]
  %s1 = inlined_call_operand.vmem [shape: s32[8,1], index: 1, kind: input, shape index: {}]
  %s2 = inlined_call_operand.hbm [shape: f32[1,8,128], index: 2, kind: output, shape index: {}]
  %s3 = sld [smem:[#allocation0]]
  $region18: #{tpu_custom_call.1} parent=0
    _
  %s5 = ssub.s32 1, %s3
  %s6 = scalar_select 0, %s5, %s3
  $region1: #{tpu_custom_call.1} parent=0
    #allocation2 [shape = 'u8[4096]{0}', space=vmem, size = 0x1000, scoped, tag = 'output window, operand 0, single buffered']
    #allocation3 [shape = 's32[1]{0}', space=sflag, size = 0x4, scoped, tag = 'scoped memory for tpu_custom_call.1']
    %7 = vsyncpa [#allocation3], 0
    // Predicated region
    $region2: #{tpu_custom_call.1} parent=1 // pred_check
      _
    $region3: #{tpu_custom_call.1} parent=1 // pred_check_branch
      %9 = sbr.rel (0) target = $region5
    $region4: #{tpu_custom_call.1} parent=1 // pred_region
      _
    $region5: #{tpu_custom_call.1} parent=1 // pred_fallthru
      _
    // Predicated region
    $region6: #{tpu_custom_call.1} parent=1 // pred_check
      _
    $region7: #{tpu_custom_call.1} parent=1 // pred_check_branch
      %11 = sbr.rel (0) target = $region9
    $region8: #{tpu_custom_call.1} parent=1 // pred_region
      _
    $region9: #{tpu_custom_call.1} parent=1 // pred_fallthru
      _
    %v12 = vld [vmem:[%s0] sm:$0xff]
    %v13 = vlaneseq
    %v14 = vand.u32 %v13, 127
    %vm15 = vcmp.lt.s32.totalorder %v14, 32
    %v16 = vsel %vm15, %v12, -1e+30
    %17 = vmax.xlane.f32.xlu0 %v16
    %v18 = vpop.xlane.xlu0 %17
    %v19 = vsub.f32 %v12, %v18
    %v20 = vsel %vm15, %v19, -1e+30
    %v21 = vmul.f32 %v20, 1.442695
    %v22 = vpow.pop %v21
    %23 = vadd.xlane.f32.xlu0 %v22
    %v24 = vpop.xlane.xlu0 %23
    %v25 = vlog2.pop %v24
    %v26 = vmul.f32 %v25, 0.6931472
    %v27 = vsel %vm15, %v19, 0.0
    %28 = vadd.xlane.f32.xlu0 %v27
    %v29 = vpop.xlane.xlu0 %28
    %v30 = vmul.f32 %v26, 32.0
    %v31 = vsub.f32 %v29, %v30
    %v32 = vld [vmem:[%s1] sm:$0xff]
    %33 = vset.pattern.permute.xlu0 0
    %34 = vperm.xlu0 %33, %v32
    %v35 = vpop.permute.xlu0 %34
    %vm36 = vcmp.eq.s32.totalorder %v14, %v35
    %v37 = vsel %vm36, %v19, 0.0
    %38 = vadd.xlane.f32.xlu0 %v37
    %v39 = vpop.xlane.xlu0 %38
    %v40 = vsub.f32 %v39, %v26
    %v41 = vmul.f32 %v40, -0.9
    %v42 = vmul.f32 %v31, 0.003125
    %v43 = vsub.f32 %v41, %v42
    %vm44 = vcmask 7168
    %v45 = vsel %vm44, %v43, 0.0
    %46 = vadd.xlane.f32.xlu0 %v45
    %v47 = vpop.xlane.xlu0 %46
    %v48 = vrot.slane %v47, 4
    %v49 = vadd.f32 %v47, %v48
    %v50 = vrot.slane %v49, 2
    %v51 = vadd.f32 %v49, %v50
    %v52 = vrot.slane %v51, 1
    %v53 = vadd.f32 %v51, %v52
    %s54 = vtos %v53
    %v55 = vstv %s54
    %56 = vst [vmem:[#allocation2] sm:$0xff] %v55
    // Predicated region
    $region10: #{tpu_custom_call.1} parent=1 // pred_check
      _
    $region11: #{tpu_custom_call.1} parent=1 // pred_check_branch
      %58 = sbr.rel (0) target = $region13
    $region12: #{tpu_custom_call.1} parent=1 // pred_region
      %s60 = ssub.s32 128, 128
      %61 = vsyncadd [#allocation3], %s60
      %s63 = sshll.u32 [#allocation2], 4
      %s64 = int_to_ptr.vmem [resolvable:$true] %s63
      %66 = dma.vmem_to_hbm [thread:$0]  %s64, 128, %s2, [#allocation3]
    $region13: #{tpu_custom_call.1} parent=1 // pred_fallthru
      _
    // Predicated region
    $region14: #{tpu_custom_call.1} parent=1 // pred_check
      _
    $region15: #{tpu_custom_call.1} parent=1 // pred_check_branch
      %68 = sbr.rel (0) target = $region17
    $region16: #{tpu_custom_call.1} parent=1 // pred_region
      %69 = dma.done [#allocation3], 128
    $region17: #{tpu_custom_call.1} parent=1 // pred_fallthru
      _
    %70 = vsyncpa [#allocation3], 1

</llo_original>
